<compile_context>
chip_gen: v7x
topology: tpu7x:2x2x1
jax: 0.10.0
libtpu: 0.0.40
codegen_flags: <defaults>
</compile_context>

<pallas_src>
import math
import jax
import jax.numpy as jnp
from jax.experimental import pallas as pl
from jax.experimental.pallas import tpu as pltpu


def temporal_kernel(sig1_ref, sig2_ref,     # SMEM (1,1) f32 — precomputed sigmoid(w)
                    x_ref,                  # (tt, tb, D_in) bf16 block (time-major)
                    W1t_ref, b1_ref,        # fc1: (D_in, H) bf16, (1, H) f32
                    Wft_ref, bf_ref,        # fc : (H, H)   bf16, (1, H) f32
                    out_ref,                # (tt, tb, H) f32 block (time-major)
                    v1_ref, v2_ref,         # VMEM (tb, H) f32 — membrane state
                    h_scr, s1_scr):         # VMEM (tt, tb, H) f32 / bf16 staging
    t_idx = pl.program_id(1)

    # Each batch tile starts at t_idx == 0 -> reset membranes to v_reset (= 0).
    @pl.when(t_idx == 0)
    def _():
        v1_ref[...] = jnp.zeros_like(v1_ref)
        v2_ref[...] = jnp.zeros_like(v2_ref)

    sig1 = sig1_ref[0, 0]
    sig2 = sig2_ref[0, 0]

    TT, TB, D_in = x_ref.shape
    H = out_ref.shape[-1]

    # ---- fc1 for the whole chunk: one (TT*TB, D_in) @ (D_in, H) MXU matmul
    # (bf16 operands, f32 accumulation).  The block is time-major so the
    # reshape is a free leading-dim collapse.
    xb = x_ref[...].reshape(TT * TB, D_in)
    h2d = jnp.dot(xb, W1t_ref[...],
                  preferred_element_type=jnp.float32) + b1_ref[...]
    h_scr[...] = h2d.reshape(TT, TB, H)                 # staged f32, time-major

    # ---- PLIF-1 scan: pure VPU recurrence over contiguous (TB, H) slabs.
    v1 = v1_ref[...]
    for t in range(TT):
        v1 = v1 + (h_scr[t] - v1) * sig1
        s1_scr[t] = (v1 >= 1.0).astype(jnp.bfloat16)    # exact 0/1 spikes
    v1_ref[...] = v1

    # ---- recurrent fc hoisted out of the time loop: ONE (TT*TB, H) @ (H, H)
    # matmul covers every time step of the chunk (spikes are exact in bf16).
    g2d = jnp.dot(s1_scr[...].reshape(TT * TB, H), Wft_ref[...],
                  preferred_element_type=jnp.float32) + bf_ref[...]
    g3 = g2d.reshape(TT, TB, H)

    # ---- PLIF-2 scan + residual; full-slab (lane-dense, unmasked) stores.
    v2 = v2_ref[...]
    for t in range(TT):
        v2 = v2 + (g3[t] - v2) * sig2
        out_ref[t] = (v2 >= 1.0).astype(jnp.float32) + h_scr[t]
    v2_ref[...] = v2


def _vmem_capacity_bytes():
    try:
        return int(pltpu.get_tpu_info().vmem_capacity_bytes)
    except Exception:
        return 64 * 1024 * 1024          # conservative (v7x-sized) fallback


def _chunk_vmem_bytes(tb, tt, d_in, h):
    """Rough per-grid-step VMEM footprint (double-buffered blocks + scratch)."""
    rows = tb * tt
    x_blk = 2 * rows * d_in * 2            # bf16 x block, double-buffered
    out_blk = 2 * rows * h * 4             # f32 out block, double-buffered
    weights = 2 * (d_in * h + h * h) * 2   # bf16 W1^T / Wf^T, double-buffered
    biases = 2 * 2 * h * 4
    state = 2 * tb * h * 4                 # v1, v2 membrane scratch
    staging = rows * h * 4 + rows * h * 2  # h_scr (f32) + s1_scr (bf16)
    temps = 2 * rows * h * 4               # matmul outputs / elementwise temps
    return x_blk + out_blk + weights + biases + state + staging + temps


def _pick_tiles(B, T, d_in, h, budget):
    """Pick (tb, tt): a large sublane-aligned batch tile first, then the
    largest time chunk whose working set fits the VMEM budget."""
    aligned = [d for d in range(8, B + 1, 8) if B % d == 0]
    if aligned:
        pref = ([d for d in aligned if d <= 256 and B // d >= 2]   # >=2 tiles (v7x)
                or [d for d in aligned if d <= 256]
                or [min(aligned)])
        tb_cands = sorted(set(pref), reverse=True)
        tb_cands += [d for d in sorted(aligned, reverse=True) if d < tb_cands[-1]]
    else:
        tb_cands = [B]                      # small / odd batch: one full tile
    tt_divs = sorted((d for d in range(1, T + 1) if T % d == 0), reverse=True)

    for tb in tb_cands:
        for tt in tt_divs:
            if tt > 64:                     # bound the unrolled scan length
                continue
            if _chunk_vmem_bytes(tb, tt, d_in, h) <= budget:
                return tb, tt
    return tb_cands[-1], 1


def temporal_processor_pallas(x, params, *, tb=None, tt=None):
    """x: [B, T, D_in] float32 -> [B, T, H] float32."""
    B, T, D_in = x.shape
    W1, b1, Wf, bf, w1, w2 = params
    H = W1.shape[0]

    # matmul operands in bf16 (f32 accumulation in-kernel); state stays f32.
    W1t = W1.T.astype(jnp.bfloat16)                     # [D_in, H]
    Wft = Wf.T.astype(jnp.bfloat16)                     # [H, H]
    b1r = b1.reshape(1, H).astype(jnp.float32)
    bfr = bf.reshape(1, H).astype(jnp.float32)
    # precompute the PLIF leak factors (SMEM scalars)
    sig1 = jax.nn.sigmoid(jnp.asarray(w1, jnp.float32)).reshape(1, 1)
    sig2 = jax.nn.sigmoid(jnp.asarray(w2, jnp.float32)).reshape(1, 1)

    # time-major bf16 input: the transpose is fused with the bf16 cast in one
    # XLA pass; it makes every in-kernel per-step slice/store a contiguous
    # lane-dense slab and halves the x DMA traffic.
    x_tm = jnp.swapaxes(x, 0, 1).astype(jnp.bfloat16)   # [T, B, D_in]

    # per-generation VMEM budget (v5e/v6e: 128 MiB physical, v7x: 64 MiB).
    vmem_cap = _vmem_capacity_bytes()
    vmem_limit = int(min(vmem_cap - (8 << 20), 100 << 20))
    budget = int(0.85 * vmem_limit)

    if tb is None or tt is None:
        tb_auto, tt_auto = _pick_tiles(B, T, D_in, H, budget)
        tb = tb_auto if tb is None else tb
        tt = tt_auto if tt is None else tt
    assert B % tb == 0 and T % tt == 0

    smem_spec = pl.BlockSpec(memory_space=pltpu.MemorySpace.SMEM)

    out_tm = pl.pallas_call(
        temporal_kernel,
        out_shape=jax.ShapeDtypeStruct((T, B, H), jnp.float32),
        grid_spec=pltpu.PrefetchScalarGridSpec(
            num_scalar_prefetch=0,
            grid=(B // tb, T // tt),
            in_specs=[
                smem_spec,                                             # sigmoid(w1)
                smem_spec,                                             # sigmoid(w2)
                pl.BlockSpec((tt, tb, D_in), lambda b, t: (t, b, 0)),  # x chunk
                pl.BlockSpec((D_in, H), lambda b, t: (0, 0)),          # W1^T
                pl.BlockSpec((1, H), lambda b, t: (0, 0)),             # b1
                pl.BlockSpec((H, H), lambda b, t: (0, 0)),             # Wf^T
                pl.BlockSpec((1, H), lambda b, t: (0, 0)),             # bf
            ],
            out_specs=pl.BlockSpec((tt, tb, H), lambda b, t: (t, b, 0)),
            scratch_shapes=[
                pltpu.VMEM((tb, H), jnp.float32),                      # v1 state
                pltpu.VMEM((tb, H), jnp.float32),                      # v2 state
                pltpu.VMEM((tt, tb, H), jnp.float32),                  # h staging
                pltpu.VMEM((tt, tb, H), jnp.bfloat16),                 # spikes
            ],
        ),
        compiler_params=pltpu.CompilerParams(
            # batch tiles are independent (megacore-shardable); the time axis
            # carries the membrane recurrence in scratch -> sequential.
            dimension_semantics=("parallel", "arbitrary"),
            vmem_limit_bytes=vmem_limit,
        ),
    )(sig1, sig2, x_tm, W1t, b1r, Wft, bfr)

    # [T, B, H] -> [B, T, H]: wrapper-side layout plumbing only.
    return jnp.swapaxes(out_tm, 0, 1)


def temporal_processor_ref(x, params):
    """Pure-JAX reference with the same semantics and the same matmul precision
    policy as the kernel (bf16 matmul operands, f32 accumulation/state)."""
    W1, b1, Wf, bf, w1, w2 = params
    B, T, D_in = x.shape
    H = W1.shape[0]
    W1t = W1.T.astype(jnp.bfloat16)
    Wft = Wf.T.astype(jnp.bfloat16)
    sig1 = jax.nn.sigmoid(w1)
    sig2 = jax.nn.sigmoid(w2)
    v1 = jnp.zeros((B, H), jnp.float32)
    v2 = jnp.zeros((B, H), jnp.float32)
    outs = []
    for t in range(T):
        h = jnp.dot(x[:, t, :].astype(jnp.bfloat16), W1t,
                    preferred_element_type=jnp.float32) + b1
        v1 = v1 + (h - v1) * sig1
        s1 = (v1 >= 1.0).astype(jnp.bfloat16)
        g = jnp.dot(s1, Wft, preferred_element_type=jnp.float32) + bf
        v2 = v2 + (g - v2) * sig2
        s2 = (v2 >= 1.0).astype(jnp.float32)
        outs.append(s2 + h)
    return jnp.stack(outs, axis=1)


def init_params(key, input_dim, hidden_dim):
    """Deterministic parameter init (nn.Linear-style uniform bounds)."""
    k1, k2, k3, k4 = jax.random.split(key, 4)
    bnd1 = 1.0 / math.sqrt(input_dim)
    bnd2 = 1.0 / math.sqrt(hidden_dim)
    W1 = jax.random.uniform(k1, (hidden_dim, input_dim), jnp.float32, -bnd1, bnd1)
    b1 = jax.random.uniform(k2, (hidden_dim,), jnp.float32, -bnd1, bnd1)
    Wf = jax.random.uniform(k3, (hidden_dim, hidden_dim), jnp.float32, -bnd2, bnd2)
    bf = jax.random.uniform(k4, (hidden_dim,), jnp.float32, -bnd2, bnd2)
    # PLIF: init_tau = 2.0  ->  w = -log(tau - 1) = 0.0
    w1 = jnp.float32(-math.log(2.0 - 1.0))
    w2 = jnp.float32(-math.log(2.0 - 1.0))
    return (W1, b1, Wf, bf, w1, w2)


if __name__ == "__main__":
    B, T, D_in, H = 2, 8, 16, 32
    key = jax.random.PRNGKey(0)
    kx, kp = jax.random.split(key)
    # scale inputs so membrane potentials actually cross the threshold sometimes
    x = 4.0 * jax.random.normal(kx, (B, T, D_in), dtype=jnp.float32)
    params = init_params(kp, D_in, H)

    run = jax.jit(temporal_processor_pallas)
    out = jax.block_until_ready(run(x, params))

    ref = temporal_processor_ref(x, params)
    assert out.shape == (B, T, H)
    max_diff = float(jnp.max(jnp.abs(out - ref)))
    assert jnp.allclose(out, ref, atol=2e-2, rtol=2e-2), (
        f"mismatch vs reference: max abs diff = {max_diff}")

    print("KERNEL_OK")
</pallas_src>

<mosaic_0001>
module attributes {stable_mosaic.version = 11 : i64} {
  func.func @temporal_kernel(%arg0: i32, %arg1: i32, %arg2: memref<1x1xf32, #tpu.memory_space<smem>>, %arg3: memref<1x1xf32, #tpu.memory_space<smem>>, %arg4: memref<8x2x16xbf16, #tpu.memory_space<vmem>>, %arg5: memref<16x32xbf16, #tpu.memory_space<vmem>>, %arg6: memref<1x32xf32, #tpu.memory_space<vmem>>, %arg7: memref<32x32xbf16, #tpu.memory_space<vmem>>, %arg8: memref<1x32xf32, #tpu.memory_space<vmem>>, %arg9: memref<8x2x32xf32, #tpu.memory_space<vmem>>, %arg10: memref<2x32xf32, #tpu.memory_space<vmem>>, %arg11: memref<2x32xf32, #tpu.memory_space<vmem>>, %arg12: memref<8x2x32xf32, #tpu.memory_space<vmem>>, %arg13: memref<8x2x32xbf16, #tpu.memory_space<vmem>>) attributes {dimension_semantics = [#tpu.dimension_semantics<parallel>, #tpu.dimension_semantics<arbitrary>], iteration_bounds = array<i64: 1, 1>, scalar_prefetch = 0 : i64, scratch_operands = 4 : i64, tpu.core_type = #tpu.core_type<tc>, window_params = [{transform_indices = @transform_0, window_bounds = array<i64: 1, 1>}, {transform_indices = @transform_1, window_bounds = array<i64: 1, 1>}, {transform_indices = @transform_2, window_bounds = array<i64: 8, 2, 16>}, {pipeline_mode = #tpu.pipeline_mode<synchronous>, transform_indices = @transform_3, window_bounds = array<i64: 16, 32>}, {pipeline_mode = #tpu.pipeline_mode<synchronous>, transform_indices = @transform_4, window_bounds = array<i64: 1, 32>}, {pipeline_mode = #tpu.pipeline_mode<synchronous>, transform_indices = @transform_5, window_bounds = array<i64: 32, 32>}, {pipeline_mode = #tpu.pipeline_mode<synchronous>, transform_indices = @transform_6, window_bounds = array<i64: 1, 32>}, {transform_indices = @transform_7, window_bounds = array<i64: 8, 2, 32>}]} {
    %c0_i32 = arith.constant 0 : i32
    %0 = arith.cmpi eq, %arg1, %c0_i32 : i32
    %1 = arith.extui %0 : i1 to i32
    %c0_i32_0 = arith.constant 0 : i32
    %2 = arith.cmpi ne, %1, %c0_i32_0 : i32
    scf.if %2 {
      %cst_135 = arith.constant 0.000000e+00 : f32
      %266 = vector.broadcast %cst_135 : f32 to vector<2x32xf32>
      %c0_136 = arith.constant 0 : index
      %c0_137 = arith.constant 0 : index
      %267 = vector.load %arg10[%c0_136, %c0_137] : memref<2x32xf32, #tpu.memory_space<vmem>>, vector<2x32xf32>
      tpu.vector_store %arg10[%c0_136, %c0_137], %266 {strides = array<i32>} : memref<2x32xf32, #tpu.memory_space<vmem>>, vector<2x32xf32>,
      %cst_138 = arith.constant 0.000000e+00 : f32
      %268 = vector.broadcast %cst_138 : f32 to vector<2x32xf32>
      %c0_139 = arith.constant 0 : index
      %c0_140 = arith.constant 0 : index
      %269 = vector.load %arg11[%c0_139, %c0_140] : memref<2x32xf32, #tpu.memory_space<vmem>>, vector<2x32xf32>
      tpu.vector_store %arg11[%c0_139, %c0_140], %268 {strides = array<i32>} : memref<2x32xf32, #tpu.memory_space<vmem>>, vector<2x32xf32>,
    } else {
    }
    %c0 = arith.constant 0 : index
    %c0_1 = arith.constant 0 : index
    %3 = memref.load %arg2[%c0, %c0_1] : memref<1x1xf32, #tpu.memory_space<smem>>
    %c0_2 = arith.constant 0 : index
    %c0_3 = arith.constant 0 : index
    %4 = memref.load %arg3[%c0_2, %c0_3] : memref<1x1xf32, #tpu.memory_space<smem>>
    %c0_4 = arith.constant 0 : index
    %c0_5 = arith.constant 0 : index
    %c0_6 = arith.constant 0 : index
    %5 = vector.load %arg4[%c0_4, %c0_5, %c0_6] : memref<8x2x16xbf16, #tpu.memory_space<vmem>>, vector<8x2x16xbf16>
    %6 = vector.shape_cast %5 : vector<8x2x16xbf16> to vector<16x16xbf16>
    %c0_7 = arith.constant 0 : index
    %c0_8 = arith.constant 0 : index
    %7 = vector.load %arg5[%c0_7, %c0_8] : memref<16x32xbf16, #tpu.memory_space<vmem>>, vector<16x32xbf16>
    %cst = arith.constant dense<0.000000e+00> : vector<16x32xf32>
    %8 = tpu.matmul %6, %7, %cst {dimension_numbers = #tpu.dot_dimension_numbers<[1], [0], [0], [1], [0, 0, 1, 1], [], []>} : vector<16x16xbf16>, vector<16x32xbf16>, vector<16x32xf32> -> vector<16x32xf32>
    %c0_9 = arith.constant 0 : index
    %c0_10 = arith.constant 0 : index
    %9 = vector.load %arg6[%c0_9, %c0_10] : memref<1x32xf32, #tpu.memory_space<vmem>>, vector<1x32xf32>
    %10 = vector.broadcast %9 : vector<1x32xf32> to vector<16x32xf32>
    %11 = arith.addf %8, %10 : vector<16x32xf32>
    %12 = vector.shape_cast %11 : vector<16x32xf32> to vector<8x2x32xf32>
    %c0_11 = arith.constant 0 : index
    %c0_12 = arith.constant 0 : index
    %c0_13 = arith.constant 0 : index
    %13 = vector.load %arg12[%c0_11, %c0_12, %c0_13] : memref<8x2x32xf32, #tpu.memory_space<vmem>>, vector<8x2x32xf32>
    tpu.vector_store %arg12[%c0_11, %c0_12, %c0_13], %12 {strides = array<i32>} : memref<8x2x32xf32, #tpu.memory_space<vmem>>, vector<8x2x32xf32>,
    %c0_14 = arith.constant 0 : index
    %c0_15 = arith.constant 0 : index
    %14 = vector.load %arg10[%c0_14, %c0_15] : memref<2x32xf32, #tpu.memory_space<vmem>>, vector<2x32xf32>
    %c0_16 = arith.constant 0 : index
    %c0_17 = arith.constant 0 : index
    %c0_18 = arith.constant 0 : index
    %15 = vector.load %arg12[%c0_16, %c0_17, %c0_18] : memref<8x2x32xf32, #tpu.memory_space<vmem>>, vector<1x2x32xf32>
    %16 = vector.shape_cast %15 : vector<1x2x32xf32> to vector<2x32xf32>
    %17 = arith.subf %16, %14 : vector<2x32xf32>
    %18 = vector.broadcast %3 : f32 to vector<2x32xf32>
    %19 = arith.mulf %17, %18 : vector<2x32xf32>
    %20 = arith.addf %14, %19 : vector<2x32xf32>
    %cst_19 = arith.constant 1.000000e+00 : f32
    %21 = vector.broadcast %cst_19 : f32 to vector<2x32xf32>
    %22 = arith.cmpf oge, %20, %21 : vector<2x32xf32>
    %23 = arith.extui %22 : vector<2x32xi1> to vector<2x32xi32>
    %24 = arith.sitofp %23 : vector<2x32xi32> to vector<2x32xf32>
    %25 = arith.truncf %24 : vector<2x32xf32> to vector<2x32xbf16>
    %c0_20 = arith.constant 0 : index
    %c0_21 = arith.constant 0 : index
    %c0_22 = arith.constant 0 : index
    %26 = vector.load %arg13[%c0_20, %c0_21, %c0_22] : memref<8x2x32xbf16, #tpu.memory_space<vmem>>, vector<1x2x32xbf16>
    %27 = vector.shape_cast %26 : vector<1x2x32xbf16> to vector<2x32xbf16>
    %28 = vector.shape_cast %25 : vector<2x32xbf16> to vector<1x2x32xbf16>
    tpu.vector_store %arg13[%c0_20, %c0_21, %c0_22], %28 {strides = array<i32>} : memref<8x2x32xbf16, #tpu.memory_space<vmem>>, vector<1x2x32xbf16>,
    %c1 = arith.constant 1 : index
    %c0_23 = arith.constant 0 : index
    %c0_24 = arith.constant 0 : index
    %29 = vector.load %arg12[%c1, %c0_23, %c0_24] : memref<8x2x32xf32, #tpu.memory_space<vmem>>, vector<1x2x32xf32>
    %30 = vector.shape_cast %29 : vector<1x2x32xf32> to vector<2x32xf32>
    %31 = arith.subf %30, %20 : vector<2x32xf32>
    %32 = vector.broadcast %3 : f32 to vector<2x32xf32>
    %33 = arith.mulf %31, %32 : vector<2x32xf32>
    %34 = arith.addf %20, %33 : vector<2x32xf32>
    %cst_25 = arith.constant 1.000000e+00 : f32
    %35 = vector.broadcast %cst_25 : f32 to vector<2x32xf32>
    %36 = arith.cmpf oge, %34, %35 : vector<2x32xf32>
    %37 = arith.extui %36 : vector<2x32xi1> to vector<2x32xi32>
    %38 = arith.sitofp %37 : vector<2x32xi32> to vector<2x32xf32>
    %39 = arith.truncf %38 : vector<2x32xf32> to vector<2x32xbf16>
    %c1_26 = arith.constant 1 : index
    %c0_27 = arith.constant 0 : index
    %c0_28 = arith.constant 0 : index
    %40 = vector.load %arg13[%c1_26, %c0_27, %c0_28] : memref<8x2x32xbf16, #tpu.memory_space<vmem>>, vector<1x2x32xbf16>
    %41 = vector.shape_cast %40 : vector<1x2x32xbf16> to vector<2x32xbf16>
    %42 = vector.shape_cast %39 : vector<2x32xbf16> to vector<1x2x32xbf16>
    tpu.vector_store %arg13[%c1_26, %c0_27, %c0_28], %42 {strides = array<i32>} : memref<8x2x32xbf16, #tpu.memory_space<vmem>>, vector<1x2x32xbf16>,
    %c2 = arith.constant 2 : index
    %c0_29 = arith.constant 0 : index
    %c0_30 = arith.constant 0 : index
    %43 = vector.load %arg12[%c2, %c0_29, %c0_30] : memref<8x2x32xf32, #tpu.memory_space<vmem>>, vector<1x2x32xf32>
    %44 = vector.shape_cast %43 : vector<1x2x32xf32> to vector<2x32xf32>
    %45 = arith.subf %44, %34 : vector<2x32xf32>
    %46 = vector.broadcast %3 : f32 to vector<2x32xf32>
    %47 = arith.mulf %45, %46 : vector<2x32xf32>
    %48 = arith.addf %34, %47 : vector<2x32xf32>
    %cst_31 = arith.constant 1.000000e+00 : f32
    %49 = vector.broadcast %cst_31 : f32 to vector<2x32xf32>
    %50 = arith.cmpf oge, %48, %49 : vector<2x32xf32>
    %51 = arith.extui %50 : vector<2x32xi1> to vector<2x32xi32>
    %52 = arith.sitofp %51 : vector<2x32xi32> to vector<2x32xf32>
    %53 = arith.truncf %52 : vector<2x32xf32> to vector<2x32xbf16>
    %c2_32 = arith.constant 2 : index
    %c0_33 = arith.constant 0 : index
    %c0_34 = arith.constant 0 : index
    %54 = vector.load %arg13[%c2_32, %c0_33, %c0_34] : memref<8x2x32xbf16, #tpu.memory_space<vmem>>, vector<1x2x32xbf16>
    %55 = vector.shape_cast %54 : vector<1x2x32xbf16> to vector<2x32xbf16>
    %56 = vector.shape_cast %53 : vector<2x32xbf16> to vector<1x2x32xbf16>
    tpu.vector_store %arg13[%c2_32, %c0_33, %c0_34], %56 {strides = array<i32>} : memref<8x2x32xbf16, #tpu.memory_space<vmem>>, vector<1x2x32xbf16>,
    %c3 = arith.constant 3 : index
    %c0_35 = arith.constant 0 : index
    %c0_36 = arith.constant 0 : index
    %57 = vector.load %arg12[%c3, %c0_35, %c0_36] : memref<8x2x32xf32, #tpu.memory_space<vmem>>, vector<1x2x32xf32>
    %58 = vector.shape_cast %57 : vector<1x2x32xf32> to vector<2x32xf32>
    %59 = arith.subf %58, %48 : vector<2x32xf32>
    %60 = vector.broadcast %3 : f32 to vector<2x32xf32>
    %61 = arith.mulf %59, %60 : vector<2x32xf32>
    %62 = arith.addf %48, %61 : vector<2x32xf32>
    %cst_37 = arith.constant 1.000000e+00 : f32
    %63 = vector.broadcast %cst_37 : f32 to vector<2x32xf32>
    %64 = arith.cmpf oge, %62, %63 : vector<2x32xf32>
    %65 = arith.extui %64 : vector<2x32xi1> to vector<2x32xi32>
    %66 = arith.sitofp %65 : vector<2x32xi32> to vector<2x32xf32>
    %67 = arith.truncf %66 : vector<2x32xf32> to vector<2x32xbf16>
    %c3_38 = arith.constant 3 : index
    %c0_39 = arith.constant 0 : index
    %c0_40 = arith.constant 0 : index
    %68 = vector.load %arg13[%c3_38, %c0_39, %c0_40] : memref<8x2x32xbf16, #tpu.memory_space<vmem>>, vector<1x2x32xbf16>
    %69 = vector.shape_cast %68 : vector<1x2x32xbf16> to vector<2x32xbf16>
    %70 = vector.shape_cast %67 : vector<2x32xbf16> to vector<1x2x32xbf16>
    tpu.vector_store %arg13[%c3_38, %c0_39, %c0_40], %70 {strides = array<i32>} : memref<8x2x32xbf16, #tpu.memory_space<vmem>>, vector<1x2x32xbf16>,
    %c4 = arith.constant 4 : index
    %c0_41 = arith.constant 0 : index
    %c0_42 = arith.constant 0 : index
    %71 = vector.load %arg12[%c4, %c0_41, %c0_42] : memref<8x2x32xf32, #tpu.memory_space<vmem>>, vector<1x2x32xf32>
    %72 = vector.shape_cast %71 : vector<1x2x32xf32> to vector<2x32xf32>
    %73 = arith.subf %72, %62 : vector<2x32xf32>
    %74 = vector.broadcast %3 : f32 to vector<2x32xf32>
    %75 = arith.mulf %73, %74 : vector<2x32xf32>
    %76 = arith.addf %62, %75 : vector<2x32xf32>
    %cst_43 = arith.constant 1.000000e+00 : f32
    %77 = vector.broadcast %cst_43 : f32 to vector<2x32xf32>
    %78 = arith.cmpf oge, %76, %77 : vector<2x32xf32>
    %79 = arith.extui %78 : vector<2x32xi1> to vector<2x32xi32>
    %80 = arith.sitofp %79 : vector<2x32xi32> to vector<2x32xf32>
    %81 = arith.truncf %80 : vector<2x32xf32> to vector<2x32xbf16>
    %c4_44 = arith.constant 4 : index
    %c0_45 = arith.constant 0 : index
    %c0_46 = arith.constant 0 : index
    %82 = vector.load %arg13[%c4_44, %c0_45, %c0_46] : memref<8x2x32xbf16, #tpu.memory_space<vmem>>, vector<1x2x32xbf16>
    %83 = vector.shape_cast %82 : vector<1x2x32xbf16> to vector<2x32xbf16>
    %84 = vector.shape_cast %81 : vector<2x32xbf16> to vector<1x2x32xbf16>
    tpu.vector_store %arg13[%c4_44, %c0_45, %c0_46], %84 {strides = array<i32>} : memref<8x2x32xbf16, #tpu.memory_space<vmem>>, vector<1x2x32xbf16>,
    %c5 = arith.constant 5 : index
    %c0_47 = arith.constant 0 : index
    %c0_48 = arith.constant 0 : index
    %85 = vector.load %arg12[%c5, %c0_47, %c0_48] : memref<8x2x32xf32, #tpu.memory_space<vmem>>, vector<1x2x32xf32>
    %86 = vector.shape_cast %85 : vector<1x2x32xf32> to vector<2x32xf32>
    %87 = arith.subf %86, %76 : vector<2x32xf32>
    %88 = vector.broadcast %3 : f32 to vector<2x32xf32>
    %89 = arith.mulf %87, %88 : vector<2x32xf32>
    %90 = arith.addf %76, %89 : vector<2x32xf32>
    %cst_49 = arith.constant 1.000000e+00 : f32
    %91 = vector.broadcast %cst_49 : f32 to vector<2x32xf32>
    %92 = arith.cmpf oge, %90, %91 : vector<2x32xf32>
    %93 = arith.extui %92 : vector<2x32xi1> to vector<2x32xi32>
    %94 = arith.sitofp %93 : vector<2x32xi32> to vector<2x32xf32>
    %95 = arith.truncf %94 : vector<2x32xf32> to vector<2x32xbf16>
    %c5_50 = arith.constant 5 : index
    %c0_51 = arith.constant 0 : index
    %c0_52 = arith.constant 0 : index
    %96 = vector.load %arg13[%c5_50, %c0_51, %c0_52] : memref<8x2x32xbf16, #tpu.memory_space<vmem>>, vector<1x2x32xbf16>
    %97 = vector.shape_cast %96 : vector<1x2x32xbf16> to vector<2x32xbf16>
    %98 = vector.shape_cast %95 : vector<2x32xbf16> to vector<1x2x32xbf16>
    tpu.vector_store %arg13[%c5_50, %c0_51, %c0_52], %98 {strides = array<i32>} : memref<8x2x32xbf16, #tpu.memory_space<vmem>>, vector<1x2x32xbf16>,
    %c6 = arith.constant 6 : index
    %c0_53 = arith.constant 0 : index
    %c0_54 = arith.constant 0 : index
    %99 = vector.load %arg12[%c6, %c0_53, %c0_54] : memref<8x2x32xf32, #tpu.memory_space<vmem>>, vector<1x2x32xf32>
    %100 = vector.shape_cast %99 : vector<1x2x32xf32> to vector<2x32xf32>
    %101 = arith.subf %100, %90 : vector<2x32xf32>
    %102 = vector.broadcast %3 : f32 to vector<2x32xf32>
    %103 = arith.mulf %101, %102 : vector<2x32xf32>
    %104 = arith.addf %90, %103 : vector<2x32xf32>
    %cst_55 = arith.constant 1.000000e+00 : f32
    %105 = vector.broadcast %cst_55 : f32 to vector<2x32xf32>
    %106 = arith.cmpf oge, %104, %105 : vector<2x32xf32>
    %107 = arith.extui %106 : vector<2x32xi1> to vector<2x32xi32>
    %108 = arith.sitofp %107 : vector<2x32xi32> to vector<2x32xf32>
    %109 = arith.truncf %108 : vector<2x32xf32> to vector<2x32xbf16>
    %c6_56 = arith.constant 6 : index
    %c0_57 = arith.constant 0 : index
    %c0_58 = arith.constant 0 : index
    %110 = vector.load %arg13[%c6_56, %c0_57, %c0_58] : memref<8x2x32xbf16, #tpu.memory_space<vmem>>, vector<1x2x32xbf16>
    %111 = vector.shape_cast %110 : vector<1x2x32xbf16> to vector<2x32xbf16>
    %112 = vector.shape_cast %109 : vector<2x32xbf16> to vector<1x2x32xbf16>
    tpu.vector_store %arg13[%c6_56, %c0_57, %c0_58], %112 {strides = array<i32>} : memref<8x2x32xbf16, #tpu.memory_space<vmem>>, vector<1x2x32xbf16>,
    %c7 = arith.constant 7 : index
    %c0_59 = arith.constant 0 : index
    %c0_60 = arith.constant 0 : index
    %113 = vector.load %arg12[%c7, %c0_59, %c0_60] : memref<8x2x32xf32, #tpu.memory_space<vmem>>, vector<1x2x32xf32>
    %114 = vector.shape_cast %113 : vector<1x2x32xf32> to vector<2x32xf32>
    %115 = arith.subf %114, %104 : vector<2x32xf32>
    %116 = vector.broadcast %3 : f32 to vector<2x32xf32>
    %117 = arith.mulf %115, %116 : vector<2x32xf32>
    %118 = arith.addf %104, %117 : vector<2x32xf32>
    %cst_61 = arith.constant 1.000000e+00 : f32
    %119 = vector.broadcast %cst_61 : f32 to vector<2x32xf32>
    %120 = arith.cmpf oge, %118, %119 : vector<2x32xf32>
    %121 = arith.extui %120 : vector<2x32xi1> to vector<2x32xi32>
    %122 = arith.sitofp %121 : vector<2x32xi32> to vector<2x32xf32>
    %123 = arith.truncf %122 : vector<2x32xf32> to vector<2x32xbf16>
    %c7_62 = arith.constant 7 : index
    %c0_63 = arith.constant 0 : index
    %c0_64 = arith.constant 0 : index
    %124 = vector.load %arg13[%c7_62, %c0_63, %c0_64] : memref<8x2x32xbf16, #tpu.memory_space<vmem>>, vector<1x2x32xbf16>
    %125 = vector.shape_cast %124 : vector<1x2x32xbf16> to vector<2x32xbf16>
    %126 = vector.shape_cast %123 : vector<2x32xbf16> to vector<1x2x32xbf16>
    tpu.vector_store %arg13[%c7_62, %c0_63, %c0_64], %126 {strides = array<i32>} : memref<8x2x32xbf16, #tpu.memory_space<vmem>>, vector<1x2x32xbf16>,
    %c0_65 = arith.constant 0 : index
    %c0_66 = arith.constant 0 : index
    %127 = vector.load %arg10[%c0_65, %c0_66] : memref<2x32xf32, #tpu.memory_space<vmem>>, vector<2x32xf32>
    tpu.vector_store %arg10[%c0_65, %c0_66], %118 {strides = array<i32>} : memref<2x32xf32, #tpu.memory_space<vmem>>, vector<2x32xf32>,
    %c0_67 = arith.constant 0 : index
    %c0_68 = arith.constant 0 : index
    %c0_69 = arith.constant 0 : index
    %128 = vector.load %arg13[%c0_67, %c0_68, %c0_69] : memref<8x2x32xbf16, #tpu.memory_space<vmem>>, vector<8x2x32xbf16>
    %129 = vector.shape_cast %128 : vector<8x2x32xbf16> to vector<16x32xbf16>
    %c0_70 = arith.constant 0 : index
    %c0_71 = arith.constant 0 : index
    %130 = vector.load %arg7[%c0_70, %c0_71] : memref<32x32xbf16, #tpu.memory_space<vmem>>, vector<32x32xbf16>
    %cst_72 = arith.constant dense<0.000000e+00> : vector<16x32xf32>
    %131 = tpu.matmul %129, %130, %cst_72 {dimension_numbers = #tpu.dot_dimension_numbers<[1], [0], [0], [1], [0, 0, 1, 1], [], []>} : vector<16x32xbf16>, vector<32x32xbf16>, vector<16x32xf32> -> vector<16x32xf32>
    %c0_73 = arith.constant 0 : index
    %c0_74 = arith.constant 0 : index
    %132 = vector.load %arg8[%c0_73, %c0_74] : memref<1x32xf32, #tpu.memory_space<vmem>>, vector<1x32xf32>
    %133 = vector.broadcast %132 : vector<1x32xf32> to vector<16x32xf32>
    %134 = arith.addf %131, %133 : vector<16x32xf32>
    %135 = vector.shape_cast %134 : vector<16x32xf32> to vector<8x2x32xf32>
    %c0_75 = arith.constant 0 : index
    %c0_76 = arith.constant 0 : index
    %136 = vector.load %arg11[%c0_75, %c0_76] : memref<2x32xf32, #tpu.memory_space<vmem>>, vector<2x32xf32>
    %137 = vector.extract_strided_slice %135 {offsets = [0, 0, 0], sizes = [1, 2, 32], strides = [1, 1, 1]} : vector<8x2x32xf32> to vector<1x2x32xf32>
    %138 = vector.shape_cast %137 : vector<1x2x32xf32> to vector<2x32xf32>
    %139 = arith.subf %138, %136 : vector<2x32xf32>
    %140 = vector.broadcast %4 : f32 to vector<2x32xf32>
    %141 = arith.mulf %139, %140 : vector<2x32xf32>
    %142 = arith.addf %136, %141 : vector<2x32xf32>
    %cst_77 = arith.constant 1.000000e+00 : f32
    %143 = vector.broadcast %cst_77 : f32 to vector<2x32xf32>
    %144 = arith.cmpf oge, %142, %143 : vector<2x32xf32>
    %145 = arith.extui %144 : vector<2x32xi1> to vector<2x32xi32>
    %146 = arith.sitofp %145 : vector<2x32xi32> to vector<2x32xf32>
    %c0_78 = arith.constant 0 : index
    %c0_79 = arith.constant 0 : index
    %c0_80 = arith.constant 0 : index
    %147 = vector.load %arg12[%c0_78, %c0_79, %c0_80] : memref<8x2x32xf32, #tpu.memory_space<vmem>>, vector<1x2x32xf32>
    %148 = vector.shape_cast %147 : vector<1x2x32xf32> to vector<2x32xf32>
    %149 = arith.addf %146, %148 : vector<2x32xf32>
    %c0_81 = arith.constant 0 : index
    %c0_82 = arith.constant 0 : index
    %c0_83 = arith.constant 0 : index
    %150 = vector.load %arg9[%c0_81, %c0_82, %c0_83] : memref<8x2x32xf32, #tpu.memory_space<vmem>>, vector<1x2x32xf32>
    %151 = vector.shape_cast %150 : vector<1x2x32xf32> to vector<2x32xf32>
    %152 = vector.shape_cast %149 : vector<2x32xf32> to vector<1x2x32xf32>
    tpu.vector_store %arg9[%c0_81, %c0_82, %c0_83], %152 {strides = array<i32>} : memref<8x2x32xf32, #tpu.memory_space<vmem>>, vector<1x2x32xf32>,
    %153 = vector.extract_strided_slice %135 {offsets = [1, 0, 0], sizes = [1, 2, 32], strides = [1, 1, 1]} : vector<8x2x32xf32> to vector<1x2x32xf32>
    %154 = vector.shape_cast %153 : vector<1x2x32xf32> to vector<2x32xf32>
    %155 = arith.subf %154, %142 : vector<2x32xf32>
    %156 = vector.broadcast %4 : f32 to vector<2x32xf32>
    %157 = arith.mulf %155, %156 : vector<2x32xf32>
    %158 = arith.addf %142, %157 : vector<2x32xf32>
    %cst_84 = arith.constant 1.000000e+00 : f32
    %159 = vector.broadcast %cst_84 : f32 to vector<2x32xf32>
    %160 = arith.cmpf oge, %158, %159 : vector<2x32xf32>
    %161 = arith.extui %160 : vector<2x32xi1> to vector<2x32xi32>
    %162 = arith.sitofp %161 : vector<2x32xi32> to vector<2x32xf32>
    %c1_85 = arith.constant 1 : index
    %c0_86 = arith.constant 0 : index
    %c0_87 = arith.constant 0 : index
    %163 = vector.load %arg12[%c1_85, %c0_86, %c0_87] : memref<8x2x32xf32, #tpu.memory_space<vmem>>, vector<1x2x32xf32>
    %164 = vector.shape_cast %163 : vector<1x2x32xf32> to vector<2x32xf32>
    %165 = arith.addf %162, %164 : vector<2x32xf32>
    %c1_88 = arith.constant 1 : index
    %c0_89 = arith.constant 0 : index
    %c0_90 = arith.constant 0 : index
    %166 = vector.load %arg9[%c1_88, %c0_89, %c0_90] : memref<8x2x32xf32, #tpu.memory_space<vmem>>, vector<1x2x32xf32>
    %167 = vector.shape_cast %166 : vector<1x2x32xf32> to vector<2x32xf32>
    %168 = vector.shape_cast %165 : vector<2x32xf32> to vector<1x2x32xf32>
    tpu.vector_store %arg9[%c1_88, %c0_89, %c0_90], %168 {strides = array<i32>} : memref<8x2x32xf32, #tpu.memory_space<vmem>>, vector<1x2x32xf32>,
    %169 = vector.extract_strided_slice %135 {offsets = [2, 0, 0], sizes = [1, 2, 32], strides = [1, 1, 1]} : vector<8x2x32xf32> to vector<1x2x32xf32>
    %170 = vector.shape_cast %169 : vector<1x2x32xf32> to vector<2x32xf32>
    %171 = arith.subf %170, %158 : vector<2x32xf32>
    %172 = vector.broadcast %4 : f32 to vector<2x32xf32>
    %173 = arith.mulf %171, %172 : vector<2x32xf32>
    %174 = arith.addf %158, %173 : vector<2x32xf32>
    %cst_91 = arith.constant 1.000000e+00 : f32
    %175 = vector.broadcast %cst_91 : f32 to vector<2x32xf32>
    %176 = arith.cmpf oge, %174, %175 : vector<2x32xf32>
    %177 = arith.extui %176 : vector<2x32xi1> to vector<2x32xi32>
    %178 = arith.sitofp %177 : vector<2x32xi32> to vector<2x32xf32>
    %c2_92 = arith.constant 2 : index
    %c0_93 = arith.constant 0 : index
    %c0_94 = arith.constant 0 : index
    %179 = vector.load %arg12[%c2_92, %c0_93, %c0_94] : memref<8x2x32xf32, #tpu.memory_space<vmem>>, vector<1x2x32xf32>
    %180 = vector.shape_cast %179 : vector<1x2x32xf32> to vector<2x32xf32>
    %181 = arith.addf %178, %180 : vector<2x32xf32>
    %c2_95 = arith.constant 2 : index
    %c0_96 = arith.constant 0 : index
    %c0_97 = arith.constant 0 : index
    %182 = vector.load %arg9[%c2_95, %c0_96, %c0_97] : memref<8x2x32xf32, #tpu.memory_space<vmem>>, vector<1x2x32xf32>
    %183 = vector.shape_cast %182 : vector<1x2x32xf32> to vector<2x32xf32>
    %184 = vector.shape_cast %181 : vector<2x32xf32> to vector<1x2x32xf32>
    tpu.vector_store %arg9[%c2_95, %c0_96, %c0_97], %184 {strides = array<i32>} : memref<8x2x32xf32, #tpu.memory_space<vmem>>, vector<1x2x32xf32>,
    %185 = vector.extract_strided_slice %135 {offsets = [3, 0, 0], sizes = [1, 2, 32], strides = [1, 1, 1]} : vector<8x2x32xf32> to vector<1x2x32xf32>
    %186 = vector.shape_cast %185 : vector<1x2x32xf32> to vector<2x32xf32>
    %187 = arith.subf %186, %174 : vector<2x32xf32>
    %188 = vector.broadcast %4 : f32 to vector<2x32xf32>
    %189 = arith.mulf %187, %188 : vector<2x32xf32>
    %190 = arith.addf %174, %189 : vector<2x32xf32>
    %cst_98 = arith.constant 1.000000e+00 : f32
    %191 = vector.broadcast %cst_98 : f32 to vector<2x32xf32>
    %192 = arith.cmpf oge, %190, %191 : vector<2x32xf32>
    %193 = arith.extui %192 : vector<2x32xi1> to vector<2x32xi32>
    %194 = arith.sitofp %193 : vector<2x32xi32> to vector<2x32xf32>
    %c3_99 = arith.constant 3 : index
    %c0_100 = arith.constant 0 : index
    %c0_101 = arith.constant 0 : index
    %195 = vector.load %arg12[%c3_99, %c0_100, %c0_101] : memref<8x2x32xf32, #tpu.memory_space<vmem>>, vector<1x2x32xf32>
    %196 = vector.shape_cast %195 : vector<1x2x32xf32> to vector<2x32xf32>
    %197 = arith.addf %194, %196 : vector<2x32xf32>
    %c3_102 = arith.constant 3 : index
    %c0_103 = arith.constant 0 : index
    %c0_104 = arith.constant 0 : index
    %198 = vector.load %arg9[%c3_102, %c0_103, %c0_104] : memref<8x2x32xf32, #tpu.memory_space<vmem>>, vector<1x2x32xf32>
    %199 = vector.shape_cast %198 : vector<1x2x32xf32> to vector<2x32xf32>
    %200 = vector.shape_cast %197 : vector<2x32xf32> to vector<1x2x32xf32>
    tpu.vector_store %arg9[%c3_102, %c0_103, %c0_104], %200 {strides = array<i32>} : memref<8x2x32xf32, #tpu.memory_space<vmem>>, vector<1x2x32xf32>,
    %201 = vector.extract_strided_slice %135 {offsets = [4, 0, 0], sizes = [1, 2, 32], strides = [1, 1, 1]} : vector<8x2x32xf32> to vector<1x2x32xf32>
    %202 = vector.shape_cast %201 : vector<1x2x32xf32> to vector<2x32xf32>
    %203 = arith.subf %202, %190 : vector<2x32xf32>
    %204 = vector.broadcast %4 : f32 to vector<2x32xf32>
    %205 = arith.mulf %203, %204 : vector<2x32xf32>
    %206 = arith.addf %190, %205 : vector<2x32xf32>
    %cst_105 = arith.constant 1.000000e+00 : f32
    %207 = vector.broadcast %cst_105 : f32 to vector<2x32xf32>
    %208 = arith.cmpf oge, %206, %207 : vector<2x32xf32>
    %209 = arith.extui %208 : vector<2x32xi1> to vector<2x32xi32>
    %210 = arith.sitofp %209 : vector<2x32xi32> to vector<2x32xf32>
    %c4_106 = arith.constant 4 : index
    %c0_107 = arith.constant 0 : index
    %c0_108 = arith.constant 0 : index
    %211 = vector.load %arg12[%c4_106, %c0_107, %c0_108] : memref<8x2x32xf32, #tpu.memory_space<vmem>>, vector<1x2x32xf32>
    %212 = vector.shape_cast %211 : vector<1x2x32xf32> to vector<2x32xf32>
    %213 = arith.addf %210, %212 : vector<2x32xf32>
    %c4_109 = arith.constant 4 : index
    %c0_110 = arith.constant 0 : index
    %c0_111 = arith.constant 0 : index
    %214 = vector.load %arg9[%c4_109, %c0_110, %c0_111] : memref<8x2x32xf32, #tpu.memory_space<vmem>>, vector<1x2x32xf32>
    %215 = vector.shape_cast %214 : vector<1x2x32xf32> to vector<2x32xf32>
    %216 = vector.shape_cast %213 : vector<2x32xf32> to vector<1x2x32xf32>
    tpu.vector_store %arg9[%c4_109, %c0_110, %c0_111], %216 {strides = array<i32>} : memref<8x2x32xf32, #tpu.memory_space<vmem>>, vector<1x2x32xf32>,
    %217 = vector.extract_strided_slice %135 {offsets = [5, 0, 0], sizes = [1, 2, 32], strides = [1, 1, 1]} : vector<8x2x32xf32> to vector<1x2x32xf32>
    %218 = vector.shape_cast %217 : vector<1x2x32xf32> to vector<2x32xf32>
    %219 = arith.subf %218, %206 : vector<2x32xf32>
    %220 = vector.broadcast %4 : f32 to vector<2x32xf32>
    %221 = arith.mulf %219, %220 : vector<2x32xf32>
    %222 = arith.addf %206, %221 : vector<2x32xf32>
    %cst_112 = arith.constant 1.000000e+00 : f32
    %223 = vector.broadcast %cst_112 : f32 to vector<2x32xf32>
    %224 = arith.cmpf oge, %222, %223 : vector<2x32xf32>
    %225 = arith.extui %224 : vector<2x32xi1> to vector<2x32xi32>
    %226 = arith.sitofp %225 : vector<2x32xi32> to vector<2x32xf32>
    %c5_113 = arith.constant 5 : index
    %c0_114 = arith.constant 0 : index
    %c0_115 = arith.constant 0 : index
    %227 = vector.load %arg12[%c5_113, %c0_114, %c0_115] : memref<8x2x32xf32, #tpu.memory_space<vmem>>, vector<1x2x32xf32>
    %228 = vector.shape_cast %227 : vector<1x2x32xf32> to vector<2x32xf32>
    %229 = arith.addf %226, %228 : vector<2x32xf32>
    %c5_116 = arith.constant 5 : index
    %c0_117 = arith.constant 0 : index
    %c0_118 = arith.constant 0 : index
    %230 = vector.load %arg9[%c5_116, %c0_117, %c0_118] : memref<8x2x32xf32, #tpu.memory_space<vmem>>, vector<1x2x32xf32>
    %231 = vector.shape_cast %230 : vector<1x2x32xf32> to vector<2x32xf32>
    %232 = vector.shape_cast %229 : vector<2x32xf32> to vector<1x2x32xf32>
    tpu.vector_store %arg9[%c5_116, %c0_117, %c0_118], %232 {strides = array<i32>} : memref<8x2x32xf32, #tpu.memory_space<vmem>>, vector<1x2x32xf32>,
    %233 = vector.extract_strided_slice %135 {offsets = [6, 0, 0], sizes = [1, 2, 32], strides = [1, 1, 1]} : vector<8x2x32xf32> to vector<1x2x32xf32>
    %234 = vector.shape_cast %233 : vector<1x2x32xf32> to vector<2x32xf32>
    %235 = arith.subf %234, %222 : vector<2x32xf32>
    %236 = vector.broadcast %4 : f32 to vector<2x32xf32>
    %237 = arith.mulf %235, %236 : vector<2x32xf32>
    %238 = arith.addf %222, %237 : vector<2x32xf32>
    %cst_119 = arith.constant 1.000000e+00 : f32
    %239 = vector.broadcast %cst_119 : f32 to vector<2x32xf32>
    %240 = arith.cmpf oge, %238, %239 : vector<2x32xf32>
    %241 = arith.extui %240 : vector<2x32xi1> to vector<2x32xi32>
    %242 = arith.sitofp %241 : vector<2x32xi32> to vector<2x32xf32>
    %c6_120 = arith.constant 6 : index
    %c0_121 = arith.constant 0 : index
    %c0_122 = arith.constant 0 : index
    %243 = vector.load %arg12[%c6_120, %c0_121, %c0_122] : memref<8x2x32xf32, #tpu.memory_space<vmem>>, vector<1x2x32xf32>
    %244 = vector.shape_cast %243 : vector<1x2x32xf32> to vector<2x32xf32>
    %245 = arith.addf %242, %244 : vector<2x32xf32>
    %c6_123 = arith.constant 6 : index
    %c0_124 = arith.constant 0 : index
    %c0_125 = arith.constant 0 : index
    %246 = vector.load %arg9[%c6_123, %c0_124, %c0_125] : memref<8x2x32xf32, #tpu.memory_space<vmem>>, vector<1x2x32xf32>
    %247 = vector.shape_cast %246 : vector<1x2x32xf32> to vector<2x32xf32>
    %248 = vector.shape_cast %245 : vector<2x32xf32> to vector<1x2x32xf32>
    tpu.vector_store %arg9[%c6_123, %c0_124, %c0_125], %248 {strides = array<i32>} : memref<8x2x32xf32, #tpu.memory_space<vmem>>, vector<1x2x32xf32>,
    %249 = vector.extract_strided_slice %135 {offsets = [7, 0, 0], sizes = [1, 2, 32], strides = [1, 1, 1]} : vector<8x2x32xf32> to vector<1x2x32xf32>
    %250 = vector.shape_cast %249 : vector<1x2x32xf32> to vector<2x32xf32>
    %251 = arith.subf %250, %238 : vector<2x32xf32>
    %252 = vector.broadcast %4 : f32 to vector<2x32xf32>
    %253 = arith.mulf %251, %252 : vector<2x32xf32>
    %254 = arith.addf %238, %253 : vector<2x32xf32>
    %cst_126 = arith.constant 1.000000e+00 : f32
    %255 = vector.broadcast %cst_126 : f32 to vector<2x32xf32>
    %256 = arith.cmpf oge, %254, %255 : vector<2x32xf32>
    %257 = arith.extui %256 : vector<2x32xi1> to vector<2x32xi32>
    %258 = arith.sitofp %257 : vector<2x32xi32> to vector<2x32xf32>
    %c7_127 = arith.constant 7 : index
    %c0_128 = arith.constant 0 : index
    %c0_129 = arith.constant 0 : index
    %259 = vector.load %arg12[%c7_127, %c0_128, %c0_129] : memref<8x2x32xf32, #tpu.memory_space<vmem>>, vector<1x2x32xf32>
    %260 = vector.shape_cast %259 : vector<1x2x32xf32> to vector<2x32xf32>
    %261 = arith.addf %258, %260 : vector<2x32xf32>
    %c7_130 = arith.constant 7 : index
    %c0_131 = arith.constant 0 : index
    %c0_132 = arith.constant 0 : index
    %262 = vector.load %arg9[%c7_130, %c0_131, %c0_132] : memref<8x2x32xf32, #tpu.memory_space<vmem>>, vector<1x2x32xf32>
    %263 = vector.shape_cast %262 : vector<1x2x32xf32> to vector<2x32xf32>
    %264 = vector.shape_cast %261 : vector<2x32xf32> to vector<1x2x32xf32>
    tpu.vector_store %arg9[%c7_130, %c0_131, %c0_132], %264 {strides = array<i32>} : memref<8x2x32xf32, #tpu.memory_space<vmem>>, vector<1x2x32xf32>,
    %c0_133 = arith.constant 0 : index
    %c0_134 = arith.constant 0 : index
    %265 = vector.load %arg11[%c0_133, %c0_134] : memref<2x32xf32, #tpu.memory_space<vmem>>, vector<2x32xf32>
    tpu.vector_store %arg11[%c0_133, %c0_134], %254 {strides = array<i32>} : memref<2x32xf32, #tpu.memory_space<vmem>>, vector<2x32xf32>,
    return
  }
  func.func @transform_0(%arg0: i32, %arg1: i32) -> (i32, i32) {
    %c0_i32 = arith.constant 0 : i32
    %c0_i32_0 = arith.constant 0 : i32
    %c0_i32_1 = arith.constant 0 : i32
    return %c0_i32, %c0_i32_0 : i32, i32
  }
  func.func @transform_1(%arg0: i32, %arg1: i32) -> (i32, i32) {
    %c0_i32 = arith.constant 0 : i32
    %c0_i32_0 = arith.constant 0 : i32
    %c0_i32_1 = arith.constant 0 : i32
    return %c0_i32, %c0_i32_0 : i32, i32
  }
  func.func @transform_2(%arg0: i32, %arg1: i32) -> (i32, i32, i32) {
    %c0_i32 = arith.constant 0 : i32
    %c0_i32_0 = arith.constant 0 : i32
    return %arg1, %arg0, %c0_i32 : i32, i32, i32
  }
  func.func @transform_3(%arg0: i32, %arg1: i32) -> (i32, i32) {
    %c0_i32 = arith.constant 0 : i32
    %c0_i32_0 = arith.constant 0 : i32
    %c0_i32_1 = arith.constant 0 : i32
    return %c0_i32, %c0_i32_0 : i32, i32
  }
  func.func @transform_4(%arg0: i32, %arg1: i32) -> (i32, i32) {
    %c0_i32 = arith.constant 0 : i32
    %c0_i32_0 = arith.constant 0 : i32
    %c0_i32_1 = arith.constant 0 : i32
    return %c0_i32, %c0_i32_0 : i32, i32
  }
  func.func @transform_5(%arg0: i32, %arg1: i32) -> (i32, i32) {
    %c0_i32 = arith.constant 0 : i32
    %c0_i32_0 = arith.constant 0 : i32
    %c0_i32_1 = arith.constant 0 : i32
    return %c0_i32, %c0_i32_0 : i32, i32
  }
  func.func @transform_6(%arg0: i32, %arg1: i32) -> (i32, i32) {
    %c0_i32 = arith.constant 0 : i32
    %c0_i32_0 = arith.constant 0 : i32
    %c0_i32_1 = arith.constant 0 : i32
    return %c0_i32, %c0_i32_0 : i32, i32
  }
  func.func @transform_7(%arg0: i32, %arg1: i32) -> (i32, i32, i32) {
    %c0_i32 = arith.constant 0 : i32
    %c0_i32_0 = arith.constant 0 : i32
    return %arg1, %arg0, %c0_i32 : i32, i32, i32
  }
}

</mosaic_0001>

<llo_original>
// kernel: temporal_processor_pallas.1
$region0: #{temporal_processor_pallas.1}
  #allocation0 [shape = 'u32[]', space=smem, size = 0x4, offset = 0x4, fixed_abs, tag = 'smem constant byte address 0x4 - core index']
  #allocation1 [shape = 'u32[144,128]{1,0:T(1,128)}', space=vmem, size = 0x12000, scoped, tag = 'internal scratch']
  #allocation2 [shape = 'f32[2,32]{1,0:T(2,128)}', space=vmem, size = 0x400, scoped, tag = 'scratch operand']
  #allocation3 [shape = 'f32[2,32]{1,0:T(2,128)}', space=vmem, size = 0x400, scoped, tag = 'scratch operand']
  #allocation4 [shape = 'f32[8,2,32]{2,1,0:T(2,128)}', space=vmem, size = 0x2000, scoped, tag = 'scratch operand']
  #allocation5 [shape = 'bf16[8,2,32]{2,1,0:T(2,128)(2,1)}', space=vmem, size = 0x1000, scoped, tag = 'scratch operand']
  #allocation6 [shape = 'f32[1,1]{1,0:T(1,128)S(6)}', space=smem, size = 0x200, scoped, tag = 'scoped memory for temporal_processor_pallas.1']
  #allocation7 [shape = 'f32[1,1]{1,0:T(1,128)S(6)}', space=smem, size = 0x200, scoped, tag = 'scoped memory for temporal_processor_pallas.1']
  %s0 = inlined_call_operand.<no memory space> [shape: f32[1,1], index: 0, kind: input, shape index: {}]
  %s1 = inlined_call_operand.<no memory space> [shape: f32[1,1], index: 1, kind: input, shape index: {}]
  %s2 = inlined_call_operand.vmem [shape: bf16[8,2,16], index: 2, kind: input, shape index: {}]
  %s3 = inlined_call_operand.vmem [shape: bf16[16,32], index: 3, kind: input, shape index: {}]
  %s4 = inlined_call_operand.vmem [shape: f32[1,32], index: 4, kind: input, shape index: {}]
  %s5 = inlined_call_operand.vmem [shape: bf16[32,32], index: 5, kind: input, shape index: {}]
  %s6 = inlined_call_operand.vmem [shape: f32[1,32], index: 6, kind: input, shape index: {}]
  %s7 = inlined_call_operand.vmem [shape: f32[8,2,32], index: 7, kind: output, shape index: {}]
  %s8 = sld [smem:[#allocation0]]
  $region42: #{temporal_processor_pallas.1} parent=0
    _
  %s10 = ssub.s32 1, %s8
  %s11 = scalar_select 0, %s10, %s8
  %12 = sst [smem:[#allocation6]] %s0
  %13 = sst [smem:[#allocation7]] %s1
  // Predicated region
  $region2: #{temporal_processor_pallas.1} parent=0 // pred_check
    _
  $region3: #{temporal_processor_pallas.1} parent=0 // pred_check_branch
    %15 = sbr.rel (0) target = $region5
  $region4: #{temporal_processor_pallas.1} parent=0 // pred_region
    _
  $region5: #{temporal_processor_pallas.1} parent=0 // pred_fallthru
    _
  // Predicated region
  $region6: #{temporal_processor_pallas.1} parent=0 // pred_check
    _
  $region7: #{temporal_processor_pallas.1} parent=0 // pred_check_branch
    %17 = sbr.rel (0) target = $region9
  $region8: #{temporal_processor_pallas.1} parent=0 // pred_region
    _
  $region9: #{temporal_processor_pallas.1} parent=0 // pred_fallthru
    _
  // Predicated region
  $region10: #{temporal_processor_pallas.1} parent=0 // pred_check
    _
  $region11: #{temporal_processor_pallas.1} parent=0 // pred_check_branch
    %19 = sbr.rel (0) target = $region13
  $region12: #{temporal_processor_pallas.1} parent=0 // pred_region
    _
  $region13: #{temporal_processor_pallas.1} parent=0 // pred_fallthru
    _
  // Predicated region
  $region14: #{temporal_processor_pallas.1} parent=0 // pred_check
    _
  $region15: #{temporal_processor_pallas.1} parent=0 // pred_check_branch
    %21 = sbr.rel (0) target = $region17
  $region16: #{temporal_processor_pallas.1} parent=0 // pred_region
    _
  $region17: #{temporal_processor_pallas.1} parent=0 // pred_fallthru
    _
  // Predicated region
  $region18: #{temporal_processor_pallas.1} parent=0 // pred_check
    _
  $region19: #{temporal_processor_pallas.1} parent=0 // pred_check_branch
    %23 = sbr.rel (0) target = $region21
  $region20: #{temporal_processor_pallas.1} parent=0 // pred_region
    _
  $region21: #{temporal_processor_pallas.1} parent=0 // pred_fallthru
    _
  // Predicated region
  $region22: #{temporal_processor_pallas.1} parent=0 // pred_check
    _
  $region23: #{temporal_processor_pallas.1} parent=0 // pred_check_branch
    %25 = sbr.rel (0) target = $region25
  $region24: #{temporal_processor_pallas.1} parent=0 // pred_region
    _
  $region25: #{temporal_processor_pallas.1} parent=0 // pred_fallthru
    _
  // Predicated region
  $region26: #{temporal_processor_pallas.1} parent=0 // pred_check
    _
  $region27: #{temporal_processor_pallas.1} parent=0 // pred_check_branch
    %27 = sbr.rel (0) target = $region29
  $region28: #{temporal_processor_pallas.1} parent=0 // pred_region
    _
  $region29: #{temporal_processor_pallas.1} parent=0 // pred_fallthru
    _
  %p29 = scmp.eq.s32.totalorder 0, 0
  // Predicated region
  $region30: #{temporal_processor_pallas.1} parent=0 // pred_check
    %p30 = pneg %p29
  $region31: #{temporal_processor_pallas.1} parent=0 // pred_check_branch
    %32 = sbr.rel (%p30) target = $region33
  $region32: #{temporal_processor_pallas.1} parent=0 // pred_region
    %vm33 = vcmask 254976
    %34 = vst.msk [vmem:[#allocation2] sm:$0x3] %vm33, 0.0
    %35 = vst.msk [vmem:[#allocation3] sm:$0x3] %vm33, 0.0
  $region33: #{temporal_processor_pallas.1} parent=0 // pred_fallthru
    _
  %s36 = sld [smem:[#allocation6]]
  %s37 = sld [smem:[#allocation7]]
  %v38 = vld [vmem:[%s2] sm:$0x1]
  %v39 = vld [vmem:[%s2 + $0x1] sm:$0x1]
  %v40 = vld [vmem:[%s2 + $0x2] sm:$0x1]
  %v41 = vld [vmem:[%s2 + $0x3] sm:$0x1]
  %v42 = vld [vmem:[%s2 + $0x4] sm:$0x1]
  %v43 = vld [vmem:[%s2 + $0x5] sm:$0x1]
  %v44 = vld [vmem:[%s2 + $0x6] sm:$0x1]
  %v45 = vld [vmem:[%s2 + $0x7] sm:$0x1]
  %v46 = vld [vmem:[%s3] sm:$0xf]
  %v47 = vld [vmem:[%s3 + $0x4] sm:$0xf]
  %v48 = vld [vmem:[%s4] sm:$0x1]
  %v50 = vlaneseq
  %v51 = vshrl.u32 %v50, 7
  %v52 = vsub.s32 0, %v51
  %v53 = vrot.slane %v48, %v52
  %v63 = vcombine.low %v38, %v39
  %v64 = vcombine.low %v40, %v41
  %v65 = vcombine.low %v42, %v43
  %v66 = vcombine.low %v44, %v45
  %v68 = vunpack.c.l.s4 1966171168
  %v69 = vunpack.c.0.s8 %v68
  %v70 = vlaneseq
  %v71 = vshrl.u32 %v70, 7
  %v72 = vsub.s32 %v69, %v71
  %v73 = vrot.slane %v63, %v72
  %v75 = vunpack.c.l.s4 1966171168
  %v76 = vunpack.c.0.s8 %v75
  %v77 = vlaneseq
  %v78 = vshrl.u32 %v77, 7
  %v79 = vsub.s32 %v76, %v78
  %v80 = vrot.slane %v64, %v79
  %v82 = vunpack.c.l.s4 1966171168
  %v83 = vunpack.c.0.s8 %v82
  %v84 = vlaneseq
  %v85 = vshrl.u32 %v84, 7
  %v86 = vsub.s32 %v83, %v85
  %v87 = vrot.slane %v65, %v86
  %v89 = vunpack.c.l.s4 1966171168
  %v90 = vunpack.c.0.s8 %v89
  %v91 = vlaneseq
  %v92 = vshrl.u32 %v91, 7
  %v93 = vsub.s32 %v90, %v92
  %v94 = vrot.slane %v66, %v93
  %v95 = vcombine.low %v73, %v80
  %v96 = vcombine.low %v87, %v94
  %v98 = vunpack.c.l.s4 1966171168
  %v99 = vunpack.c.0.s8 %v98
  %v100 = vlaneseq
  %v101 = vshrl.u32 %v100, 7
  %v102 = vsub.s32 %v99, %v101
  %v103 = vrot.slane %v95, %v102
  %v105 = vunpack.c.l.s4 1966171168
  %v106 = vunpack.c.0.s8 %v105
  %v107 = vlaneseq
  %v108 = vshrl.u32 %v107, 7
  %v109 = vsub.s32 %v106, %v108
  %v110 = vrot.slane %v96, %v109
  %v111 = vcombine.low %v103, %v110
  %v114 = vunpack.c.l.b16 %v46
  %v115 = vunpack.c.l.b16 %v47
  %v116 = vpack.c.b16 %v115, %v114
  %vm118 = vcmask 130048
  %v120 = vsel %vm118, %v111, 0
  %122 = vmatprep.subr.bf16.mxu0 0
  %123 = vmatpush1.bf16.msra.mxu0 %v116
  %124 = vmatprep.subr.bf16.mxu0 0
  %125 = vmatpush1.bf16.msra.mxu0 0
  %126 = vmatprep.subr.bf16.mxu0 0
  %127 = vmatpush1.bf16.msra.mxu0 0
  %128 = vmatprep.subr.bf16.mxu0 0
  %129 = vmatpush1.bf16.msra.mxu0 0
  %130 = vmatprep.subr.bf16.mxu0 0
  %131 = vmatpush1.bf16.msra.mxu0 0
  %132 = vmatprep.subr.bf16.mxu0 0
  %133 = vmatpush1.bf16.msra.mxu0 0
  %134 = vmatprep.subr.bf16.mxu0 0
  %135 = vmatpush1.bf16.msra.mxu0 0
  %136 = vmatprep.subr.bf16.mxu0 0
  %137 = vmatpush1.bf16.msra.mxu0 0
  %138 = vmatprep.subr.bf16.mxu0 0
  %139 = vmatpush1.bf16.msra.mxu0 0
  %140 = vmatprep.subr.bf16.mxu0 0
  %141 = vmatpush1.bf16.msra.mxu0 0
  %142 = vmatprep.subr.bf16.mxu0 0
  %143 = vmatpush1.bf16.msra.mxu0 0
  %144 = vmatprep.subr.bf16.mxu0 0
  %145 = vmatpush1.bf16.msra.mxu0 0
  %146 = vmatprep.subr.bf16.mxu0 0
  %147 = vmatpush1.bf16.msra.mxu0 0
  %148 = vmatprep.subr.bf16.mxu0 0
  %149 = vmatpush1.bf16.msra.mxu0 0
  %150 = vmatprep.subr.bf16.mxu0 0
  %151 = vmatpush1.bf16.msra.mxu0 0
  %152 = vmatprep.subr.bf16.mxu0 0
  %153 = vmatpush1.bf16.msra.mxu0 0
  %154 = vmatprep.mubr.bf16.mxu0 0
  %155 = vmatmul.mubr.bf16.gmra.mrb[0].mxu0 %v120
  %v156 = vpop.f32.mrb[0].mxu0
  %v157 = vadd.f32 %v53, %v156
  %v158 = vpop.f32.mrb[0].mxu0
  %v159 = vpop.f32.mrb[0].mxu0
  %v160 = vadd.f32 %v53, %v159
  %v161 = vpop.f32.mrb[0].mxu0
  %162 = vdwg.mxu0
  %v165 = vcombine.high %v157, %v157
  %v167 = vunpack.c.l.s4 1983009808
  %v168 = vunpack.c.0.s8 %v167
  %v169 = vlaneseq
  %v170 = vshrl.u32 %v169, 7
  %v171 = vsub.s32 %v168, %v170
  %v172 = vrot.slane %v157, %v171
  %v174 = vunpack.c.l.s4 1983009808
  %v175 = vunpack.c.0.s8 %v174
  %v176 = vlaneseq
  %v177 = vshrl.u32 %v176, 7
  %v178 = vsub.s32 %v175, %v177
  %v179 = vrot.slane %v165, %v178
  %v180 = vcombine.high %v172, %v172
  %v181 = vcombine.high %v179, %v179
  %v182 = vcombine.high %v160, %v160
  %v184 = vunpack.c.l.s4 1983009808
  %v185 = vunpack.c.0.s8 %v184
  %v186 = vlaneseq
  %v187 = vshrl.u32 %v186, 7
  %v188 = vsub.s32 %v185, %v187
  %v189 = vrot.slane %v160, %v188
  %v191 = vunpack.c.l.s4 1983009808
  %v192 = vunpack.c.0.s8 %v191
  %v193 = vlaneseq
  %v194 = vshrl.u32 %v193, 7
  %v195 = vsub.s32 %v192, %v194
  %v196 = vrot.slane %v182, %v195
  %v197 = vcombine.high %v189, %v189
  %v198 = vcombine.high %v196, %v196
  %vm207 = vcmask 254976
  %208 = vst.msk [vmem:[#allocation4] sm:$0x3] %vm207, %v172
  %209 = vst.msk [vmem:[#allocation4 + $0x2] sm:$0x3] %vm207, %v180
  %210 = vst.msk [vmem:[#allocation4 + $0x4] sm:$0x3] %vm207, %v179
  %211 = vst.msk [vmem:[#allocation4 + $0x6] sm:$0x3] %vm207, %v181
  %212 = vst.msk [vmem:[#allocation4 + $0x8] sm:$0x3] %vm207, %v189
  %213 = vst.msk [vmem:[#allocation4 + $0xa] sm:$0x3] %vm207, %v197
  %214 = vst.msk [vmem:[#allocation4 + $0xc] sm:$0x3] %vm207, %v196
  %215 = vst.msk [vmem:[#allocation4 + $0xe] sm:$0x3] %vm207, %v198
  %v216 = vld [vmem:[#allocation2] sm:$0x3]
  %v217 = vld [vmem:[#allocation4] sm:$0x3]
  %v218 = vsub.f32 %v217, %v216
  %v219 = vstv %s36
  %v220 = vmul.f32 %v218, %v219
  %v221 = vadd.f32 %v216, %v220
  %vm222 = vcmp.ge.f32.partialorder %v221, 1.0
  %v223 = vsel %vm222, 1, 0
  %v224 = vcvt.s32.f32 %v223
  %v225 = vpack.c.bf16 %v224, %v224
  %vm226 = vcmask 253952
  %227 = vst.msk [vmem:[#allocation5] sm:$0x1] %vm226, %v225
  %s228 = scalar_lea.vmem [#allocation4], 2
  %v229 = vld [vmem:[%s228] sm:$0x3]
  %v230 = vsub.f32 %v229, %v221
  %v231 = vmul.f32 %v230, %v219
  %v232 = vadd.f32 %v221, %v231
  %vm233 = vcmp.ge.f32.partialorder %v232, 1.0
  %v234 = vsel %vm233, 1, 0
  %v235 = vcvt.s32.f32 %v234
  %v236 = vpack.c.bf16 %v235, %v235
  %s237 = scalar_lea.vmem [#allocation5], 1
  %238 = vst.msk [vmem:[%s237] sm:$0x1] %vm226, %v236
  %s239 = scalar_lea.vmem [#allocation4], 4
  %v240 = vld [vmem:[%s239] sm:$0x3]
  %v241 = vsub.f32 %v240, %v232
  %v242 = vmul.f32 %v241, %v219
  %v243 = vadd.f32 %v232, %v242
  %vm244 = vcmp.ge.f32.partialorder %v243, 1.0
  %v245 = vsel %vm244, 1, 0
  %v246 = vcvt.s32.f32 %v245
  %v247 = vpack.c.bf16 %v246, %v246
  %s248 = scalar_lea.vmem [#allocation5], 2
  %249 = vst.msk [vmem:[%s248] sm:$0x1] %vm226, %v247
  %s250 = scalar_lea.vmem [#allocation4], 6
  %v251 = vld [vmem:[%s250] sm:$0x3]
  %v252 = vsub.f32 %v251, %v243
  %v253 = vmul.f32 %v252, %v219
  %v254 = vadd.f32 %v243, %v253
  %vm255 = vcmp.ge.f32.partialorder %v254, 1.0
  %v256 = vsel %vm255, 1, 0
  %v257 = vcvt.s32.f32 %v256
  %v258 = vpack.c.bf16 %v257, %v257
  %s259 = scalar_lea.vmem [#allocation5], 3
  %260 = vst.msk [vmem:[%s259] sm:$0x1] %vm226, %v258
  %s261 = scalar_lea.vmem [#allocation4], 8
  %v262 = vld [vmem:[%s261] sm:$0x3]
  %v263 = vsub.f32 %v262, %v254
  %v264 = vmul.f32 %v263, %v219
  %v265 = vadd.f32 %v254, %v264
  %vm266 = vcmp.ge.f32.partialorder %v265, 1.0
  %v267 = vsel %vm266, 1, 0
  %v268 = vcvt.s32.f32 %v267
  %v269 = vpack.c.bf16 %v268, %v268
  %s270 = scalar_lea.vmem [#allocation5], 4
  %271 = vst.msk [vmem:[%s270] sm:$0x1] %vm226, %v269
  %s272 = scalar_lea.vmem [#allocation4], 10
  %v273 = vld [vmem:[%s272] sm:$0x3]
  %v274 = vsub.f32 %v273, %v265
  %v275 = vmul.f32 %v274, %v219
  %v276 = vadd.f32 %v265, %v275
  %vm277 = vcmp.ge.f32.partialorder %v276, 1.0
  %v278 = vsel %vm277, 1, 0
  %v279 = vcvt.s32.f32 %v278
  %v280 = vpack.c.bf16 %v279, %v279
  %s281 = scalar_lea.vmem [#allocation5], 5
  %282 = vst.msk [vmem:[%s281] sm:$0x1] %vm226, %v280
  %s283 = scalar_lea.vmem [#allocation4], 12
  %v284 = vld [vmem:[%s283] sm:$0x3]
  %v285 = vsub.f32 %v284, %v276
  %v286 = vmul.f32 %v285, %v219
  %v287 = vadd.f32 %v276, %v286
  %vm288 = vcmp.ge.f32.partialorder %v287, 1.0
  %v289 = vsel %vm288, 1, 0
  %v290 = vcvt.s32.f32 %v289
  %v291 = vpack.c.bf16 %v290, %v290
  %s292 = scalar_lea.vmem [#allocation5], 6
  %293 = vst.msk [vmem:[%s292] sm:$0x1] %vm226, %v291
  %s294 = scalar_lea.vmem [#allocation4], 14
  %v295 = vld [vmem:[%s294] sm:$0x3]
  %v296 = vsub.f32 %v295, %v287
  %v297 = vmul.f32 %v296, %v219
  %v298 = vadd.f32 %v287, %v297
  %vm299 = vcmp.ge.f32.partialorder %v298, 1.0
  %v300 = vsel %vm299, 1, 0
  %v301 = vcvt.s32.f32 %v300
  %v302 = vpack.c.bf16 %v301, %v301
  %s303 = scalar_lea.vmem [#allocation5], 7
  %304 = vst.msk [vmem:[%s303] sm:$0x1] %vm226, %v302
  %305 = vst.msk [vmem:[#allocation2] sm:$0x3] %vm207, %v298
  %v306 = vld [vmem:[#allocation5] sm:$0x1]
  %v307 = vld [vmem:[#allocation5 + $0x1] sm:$0x1]
  %v308 = vld [vmem:[#allocation5 + $0x2] sm:$0x1]
  %v309 = vld [vmem:[#allocation5 + $0x3] sm:$0x1]
  %v310 = vld [vmem:[#allocation5 + $0x4] sm:$0x1]
  %v311 = vld [vmem:[#allocation5 + $0x5] sm:$0x1]
  %v312 = vld [vmem:[#allocation5 + $0x6] sm:$0x1]
  %v313 = vld [vmem:[#allocation5 + $0x7] sm:$0x1]
  %v314 = vld [vmem:[%s5] sm:$0xf]
  %v315 = vld [vmem:[%s5 + $0x4] sm:$0xf]
  %v316 = vld [vmem:[%s5 + $0x8] sm:$0xf]
  %v317 = vld [vmem:[%s5 + $0xc] sm:$0xf]
  %v318 = vld [vmem:[%s6] sm:$0x1]
  %v320 = vlaneseq
  %v321 = vshrl.u32 %v320, 7
  %v322 = vsub.s32 0, %v321
  %v323 = vrot.slane %v318, %v322
  %v333 = vcombine.low %v306, %v307
  %v334 = vcombine.low %v308, %v309
  %v335 = vcombine.low %v310, %v311
  %v336 = vcombine.low %v312, %v313
  %v338 = vunpack.c.l.s4 1966171168
  %v339 = vunpack.c.0.s8 %v338
  %v340 = vlaneseq
  %v341 = vshrl.u32 %v340, 7
  %v342 = vsub.s32 %v339, %v341
  %v343 = vrot.slane %v333, %v342
  %v345 = vunpack.c.l.s4 1966171168
  %v346 = vunpack.c.0.s8 %v345
  %v347 = vlaneseq
  %v348 = vshrl.u32 %v347, 7
  %v349 = vsub.s32 %v346, %v348
  %v350 = vrot.slane %v334, %v349
  %v352 = vunpack.c.l.s4 1966171168
  %v353 = vunpack.c.0.s8 %v352
  %v354 = vlaneseq
  %v355 = vshrl.u32 %v354, 7
  %v356 = vsub.s32 %v353, %v355
  %v357 = vrot.slane %v335, %v356
  %v359 = vunpack.c.l.s4 1966171168
  %v360 = vunpack.c.0.s8 %v359
  %v361 = vlaneseq
  %v362 = vshrl.u32 %v361, 7
  %v363 = vsub.s32 %v360, %v362
  %v364 = vrot.slane %v336, %v363
  %v365 = vcombine.low %v343, %v350
  %v366 = vcombine.low %v357, %v364
  %v368 = vunpack.c.l.s4 1966171168
  %v369 = vunpack.c.0.s8 %v368
  %v370 = vlaneseq
  %v371 = vshrl.u32 %v370, 7
  %v372 = vsub.s32 %v369, %v371
  %v373 = vrot.slane %v365, %v372
  %v375 = vunpack.c.l.s4 1966171168
  %v376 = vunpack.c.0.s8 %v375
  %v377 = vlaneseq
  %v378 = vshrl.u32 %v377, 7
  %v379 = vsub.s32 %v376, %v378
  %v380 = vrot.slane %v366, %v379
  %v381 = vcombine.low %v373, %v380
  %v386 = vunpack.c.l.b16 %v314
  %v387 = vunpack.c.l.b16 %v315
  %v388 = vunpack.c.l.b16 %v316
  %v389 = vunpack.c.l.b16 %v317
  %v390 = vpack.c.b16 %v387, %v386
  %v391 = vpack.c.b16 %v389, %v388
  %vm394 = vcmask 261120
  %v396 = vsel %vm394, %v381, 0
  %398 = vmatprep.subr.bf16.mxu0 0
  %399 = vmatpush1.bf16.msra.mxu0 %v390
  %400 = vmatprep.subr.bf16.mxu0 0
  %401 = vmatpush1.bf16.msra.mxu0 %v391
  %402 = vmatprep.subr.bf16.mxu0 0
  %403 = vmatpush1.bf16.msra.mxu0 0
  %404 = vmatprep.subr.bf16.mxu0 0
  %405 = vmatpush1.bf16.msra.mxu0 0
  %406 = vmatprep.subr.bf16.mxu0 0
  %407 = vmatpush1.bf16.msra.mxu0 0
  %408 = vmatprep.subr.bf16.mxu0 0
  %409 = vmatpush1.bf16.msra.mxu0 0
  %410 = vmatprep.subr.bf16.mxu0 0
  %411 = vmatpush1.bf16.msra.mxu0 0
  %412 = vmatprep.subr.bf16.mxu0 0
  %413 = vmatpush1.bf16.msra.mxu0 0
  %414 = vmatprep.subr.bf16.mxu0 0
  %415 = vmatpush1.bf16.msra.mxu0 0
  %416 = vmatprep.subr.bf16.mxu0 0
  %417 = vmatpush1.bf16.msra.mxu0 0
  %418 = vmatprep.subr.bf16.mxu0 0
  %419 = vmatpush1.bf16.msra.mxu0 0
  %420 = vmatprep.subr.bf16.mxu0 0
  %421 = vmatpush1.bf16.msra.mxu0 0
  %422 = vmatprep.subr.bf16.mxu0 0
  %423 = vmatpush1.bf16.msra.mxu0 0
  %424 = vmatprep.subr.bf16.mxu0 0
  %425 = vmatpush1.bf16.msra.mxu0 0
  %426 = vmatprep.subr.bf16.mxu0 0
  %427 = vmatpush1.bf16.msra.mxu0 0
  %428 = vmatprep.subr.bf16.mxu0 0
  %429 = vmatpush1.bf16.msra.mxu0 0
  %430 = vmatprep.mubr.bf16.mxu0 0
  %431 = vmatmul.mubr.bf16.gmra.mrb[0].mxu0 %v396
  %v432 = vpop.f32.mrb[0].mxu0
  %v433 = vadd.f32 %v323, %v432
  %v434 = vpop.f32.mrb[0].mxu0
  %v435 = vpop.f32.mrb[0].mxu0
  %v436 = vadd.f32 %v323, %v435
  %v437 = vpop.f32.mrb[0].mxu0
  %438 = vdwg.mxu0
  %v441 = vcombine.high %v433, %v433
  %v443 = vunpack.c.l.s4 1983009808
  %v444 = vunpack.c.0.s8 %v443
  %v445 = vlaneseq
  %v446 = vshrl.u32 %v445, 7
  %v447 = vsub.s32 %v444, %v446
  %v448 = vrot.slane %v433, %v447
  %v450 = vunpack.c.l.s4 1983009808
  %v451 = vunpack.c.0.s8 %v450
  %v452 = vlaneseq
  %v453 = vshrl.u32 %v452, 7
  %v454 = vsub.s32 %v451, %v453
  %v455 = vrot.slane %v441, %v454
  %v456 = vcombine.high %v448, %v448
  %v457 = vcombine.high %v455, %v455
  %v458 = vcombine.high %v436, %v436
  %v460 = vunpack.c.l.s4 1983009808
  %v461 = vunpack.c.0.s8 %v460
  %v462 = vlaneseq
  %v463 = vshrl.u32 %v462, 7
  %v464 = vsub.s32 %v461, %v463
  %v465 = vrot.slane %v436, %v464
  %v467 = vunpack.c.l.s4 1983009808
  %v468 = vunpack.c.0.s8 %v467
  %v469 = vlaneseq
  %v470 = vshrl.u32 %v469, 7
  %v471 = vsub.s32 %v468, %v470
  %v472 = vrot.slane %v458, %v471
  %v473 = vcombine.high %v465, %v465
  %v474 = vcombine.high %v472, %v472
  %v483 = vld [vmem:[#allocation3] sm:$0x3]
  %v484 = vsub.f32 %v448, %v483
  %v485 = vstv %s37
  %v486 = vmul.f32 %v484, %v485
  %v487 = vadd.f32 %v483, %v486
  %vm488 = vcmp.ge.f32.partialorder %v487, 1.0
  %v489 = vsel %vm488, 1, 0
  %v490 = vcvt.s32.f32 %v489
  %v491 = vld [vmem:[#allocation4] sm:$0x3]
  %v492 = vadd.f32 %v490, %v491
  %493 = vst.msk [vmem:[%s7] sm:$0x3] %vm207, %v492
  %v494 = vsub.f32 %v456, %v487
  %v495 = vmul.f32 %v494, %v485
  %v496 = vadd.f32 %v487, %v495
  %vm497 = vcmp.ge.f32.partialorder %v496, 1.0
  %v498 = vsel %vm497, 1, 0
  %v499 = vcvt.s32.f32 %v498
  %v500 = vld [vmem:[%s228] sm:$0x3]
  %v501 = vadd.f32 %v499, %v500
  %s502 = scalar_lea.vmem %s7, 2
  %503 = vst.msk [vmem:[%s502] sm:$0x3] %vm207, %v501
  %v504 = vsub.f32 %v455, %v496
  %v505 = vmul.f32 %v504, %v485
  %v506 = vadd.f32 %v496, %v505
  %vm507 = vcmp.ge.f32.partialorder %v506, 1.0
  %v508 = vsel %vm507, 1, 0
  %v509 = vcvt.s32.f32 %v508
  %v510 = vld [vmem:[%s239] sm:$0x3]
  %v511 = vadd.f32 %v509, %v510
  %s512 = scalar_lea.vmem %s7, 4
  %513 = vst.msk [vmem:[%s512] sm:$0x3] %vm207, %v511
  %v514 = vsub.f32 %v457, %v506
  %v515 = vmul.f32 %v514, %v485
  %v516 = vadd.f32 %v506, %v515
  %vm517 = vcmp.ge.f32.partialorder %v516, 1.0
  %v518 = vsel %vm517, 1, 0
  %v519 = vcvt.s32.f32 %v518
  %v520 = vld [vmem:[%s250] sm:$0x3]
  %v521 = vadd.f32 %v519, %v520
  %s522 = scalar_lea.vmem %s7, 6
  %523 = vst.msk [vmem:[%s522] sm:$0x3] %vm207, %v521
  %v524 = vsub.f32 %v465, %v516
  %v525 = vmul.f32 %v524, %v485
  %v526 = vadd.f32 %v516, %v525
  %vm527 = vcmp.ge.f32.partialorder %v526, 1.0
  %v528 = vsel %vm527, 1, 0
  %v529 = vcvt.s32.f32 %v528
  %v530 = vld [vmem:[%s261] sm:$0x3]
  %v531 = vadd.f32 %v529, %v530
  %s532 = scalar_lea.vmem %s7, 8
  %533 = vst.msk [vmem:[%s532] sm:$0x3] %vm207, %v531
  %v534 = vsub.f32 %v473, %v526
  %v535 = vmul.f32 %v534, %v485
  %v536 = vadd.f32 %v526, %v535
  %vm537 = vcmp.ge.f32.partialorder %v536, 1.0
  %v538 = vsel %vm537, 1, 0
  %v539 = vcvt.s32.f32 %v538
  %v540 = vld [vmem:[%s272] sm:$0x3]
  %v541 = vadd.f32 %v539, %v540
  %s542 = scalar_lea.vmem %s7, 10
  %543 = vst.msk [vmem:[%s542] sm:$0x3] %vm207, %v541
  %v544 = vsub.f32 %v472, %v536
  %v545 = vmul.f32 %v544, %v485
  %v546 = vadd.f32 %v536, %v545
  %vm547 = vcmp.ge.f32.partialorder %v546, 1.0
  %v548 = vsel %vm547, 1, 0
  %v549 = vcvt.s32.f32 %v548
  %v550 = vld [vmem:[%s283] sm:$0x3]
  %v551 = vadd.f32 %v549, %v550
  %s552 = scalar_lea.vmem %s7, 12
  %553 = vst.msk [vmem:[%s552] sm:$0x3] %vm207, %v551
  %v554 = vsub.f32 %v474, %v546
  %v555 = vmul.f32 %v554, %v485
  %v556 = vadd.f32 %v546, %v555
  %vm557 = vcmp.ge.f32.partialorder %v556, 1.0
  %v558 = vsel %vm557, 1, 0
  %v559 = vcvt.s32.f32 %v558
  %v560 = vld [vmem:[%s294] sm:$0x3]
  %v561 = vadd.f32 %v559, %v560
  %s562 = scalar_lea.vmem %s7, 14
  %563 = vst.msk [vmem:[%s562] sm:$0x3] %vm207, %v561
  %564 = vst.msk [vmem:[#allocation3] sm:$0x3] %vm207, %v556
  // Predicated region
  $region34: #{temporal_processor_pallas.1} parent=0 // pred_check
    _
  $region35: #{temporal_processor_pallas.1} parent=0 // pred_check_branch
    %566 = sbr.rel (0) target = $region37
  $region36: #{temporal_processor_pallas.1} parent=0 // pred_region
    _
  $region37: #{temporal_processor_pallas.1} parent=0 // pred_fallthru
    _
  // Predicated region
  $region38: #{temporal_processor_pallas.1} parent=0 // pred_check
    _
  $region39: #{temporal_processor_pallas.1} parent=0 // pred_check_branch
    %568 = sbr.rel (0) target = $region41
  $region40: #{temporal_processor_pallas.1} parent=0 // pred_region
    _
  $region41: #{temporal_processor_pallas.1} parent=0 // pred_fallthru
    _

</llo_original>
